<compile_context>
chip_gen: v5e
topology: v5e:2x2
jax: 0.10.0
libtpu: 0.0.40
codegen_flags: <defaults>
</compile_context>

<pallas_src>
import functools

import jax
import jax.numpy as jnp
from jax.experimental import pallas as pl
from jax.experimental.pallas import tpu as pltpu


_SUBLANES = 8  # pad batch to one full sublane group -> vreg-aligned slices


def _rnn_kernel(x_ref, wih_ref, whh_ref, bias_ref, wfc_ref, bfc_ref, out_ref,
                *, seq_len, batch_pad):
    """x_ref: (T*Bp, I) time-major bf16; weights pre-transposed, bf16.

    bias_ref: (1, H) f32 fused (b_ih + b_hh); bfc_ref: (1, O) f32.
    """
    hidden = whh_ref.shape[1]

    # Hoisted input projection: one bf16 MXU call covers every timestep,
    # accumulated in f32, fused RNN bias added once.  Shape: (T*Bp, H) f32.
    xp = (jnp.dot(x_ref[...], wih_ref[...],
                  preferred_element_type=jnp.float32)
          + bias_ref[...])

    whh = whh_ref[...]  # (H, H) bf16, loaded once, live across the loop.

    # Serial recurrence: fully unrolled at trace time (seq_len is a small
    # static constant).  Each step is one bf16 MXU pass + f32 add + EUP tanh.
    # All slices are sublane-aligned (batch_pad == 8), so each xp_t is a
    # clean whole-vreg read with no per-step shuffle work.
    h = jnp.zeros((batch_pad, hidden), jnp.float32)
    for t in range(seq_len):
        xp_t = xp[t * batch_pad:(t + 1) * batch_pad, :]      # (Bp, H) f32
        hh = jnp.dot(h.astype(jnp.bfloat16), whh,
                     preferred_element_type=jnp.float32)
        h = jnp.tanh(xp_t + hh)

    # Final Linear on the last hidden state.  O < 128 -> masked store, but it
    # is a single tiny (Bp, O) write.  Padded garbage rows are written here
    # and sliced away in the wrapper; they are never read as real output.
    out = (jnp.dot(h.astype(jnp.bfloat16), wfc_ref[...],
                   preferred_element_type=jnp.float32)
           + bfc_ref[...])
    out_ref[...] = out.astype(out_ref.dtype)


def prepare_params(w_ih, w_hh, b_ih, b_hh, w_fc, b_fc):
    """One-time parameter preparation (transpose, bias fusion, bf16 cast)."""
    return dict(
        wih_t=jnp.transpose(w_ih).astype(jnp.bfloat16),   # (I, H)
        whh_t=jnp.transpose(w_hh).astype(jnp.bfloat16),   # (H, H)
        wfc_t=jnp.transpose(w_fc).astype(jnp.bfloat16),   # (H, O)
        bias=(b_ih + b_hh).reshape(1, -1).astype(jnp.float32),  # (1, H)
        bfc=b_fc.reshape(1, -1).astype(jnp.float32),             # (1, O)
    )


def temp_rnn_forward(x, params):
    """x: (B, T, I) float32 — same convention as the PyTorch module."""
    B, T, I = x.shape
    H = params["whh_t"].shape[0]
    O = params["wfc_t"].shape[1]
    Bp = ((B + _SUBLANES - 1) // _SUBLANES) * _SUBLANES   # batch padded to 8

    # Layout glue (fused into the surrounding jit): pad batch to Bp, go
    # time-major, flatten to (T*Bp, I), cast to bf16 for the MXU.
    x_pad = jnp.pad(x, ((0, Bp - B), (0, 0), (0, 0)))
    x_tb_i = (jnp.transpose(x_pad, (1, 0, 2))
              .reshape(T * Bp, I)
              .astype(jnp.bfloat16))

    kernel = functools.partial(_rnn_kernel, seq_len=T, batch_pad=Bp)

    # Advisory cost hint: tiny, latency-bound custom call.
    flops = 2 * T * Bp * H * (I + H) + 2 * Bp * H * O
    bytes_accessed = (T * Bp * I * 2 + I * H * 2 + H * H * 2 + H * O * 2
                      + H * 4 + O * 4 + Bp * O * 4)
    cost = pl.CostEstimate(flops=flops,
                           transcendentals=T * Bp * H,
                           bytes_accessed=bytes_accessed)

    vmem_spec = pl.BlockSpec(memory_space=pltpu.MemorySpace.VMEM)

    # Single grid-less invocation: every operand is a whole-array resident
    # VMEM block (total footprint is a few KB, far under the VMEM limit on
    # any TPU generation, including v7x's 64 MiB).
    out_pad = pl.pallas_call(
        kernel,
        out_shape=jax.ShapeDtypeStruct((Bp, O), jnp.float32),
        in_specs=[vmem_spec] * 6,
        out_specs=vmem_spec,
        cost_estimate=cost,
    )(x_tb_i, params["wih_t"], params["whh_t"], params["bias"],
      params["wfc_t"], params["bfc"])

    return out_pad[:B]   # drop zero-padded rows (fused slice, outside kernel)


temp_rnn_forward_jit = jax.jit(temp_rnn_forward)


def temp_rnn_reference(x, w_ih, w_hh, b_ih, b_hh, w_fc, b_fc):
    """Pure-JAX f32 reference matching torch.nn.RNN(batch_first=True)+Linear."""
    B, T, I = x.shape
    H = w_ih.shape[0]
    h = jnp.zeros((B, H), jnp.float32)
    for t in range(T):
        h = jnp.tanh(x[:, t, :] @ w_ih.T + b_ih + h @ w_hh.T + b_hh)
    return h @ w_fc.T + b_fc


if __name__ == "__main__":
    # Small shapes consistent with the module's forward.
    B, T = 2, 8
    input_size, hidden_size, output_size = 16, 32, 8

    key = jax.random.PRNGKey(0)
    kx, k1, k2, k3, k4, k5, k6 = jax.random.split(key, 7)

    x = jax.random.normal(kx, (B, T, input_size), jnp.float32)

    # Deterministic parameter init (uniform, roughly like PyTorch's default).
    s_rnn = 1.0 / jnp.sqrt(hidden_size)
    w_ih = jax.random.uniform(k1, (hidden_size, input_size), jnp.float32, -s_rnn, s_rnn)
    w_hh = jax.random.uniform(k2, (hidden_size, hidden_size), jnp.float32, -s_rnn, s_rnn)
    b_ih = jax.random.uniform(k3, (hidden_size,), jnp.float32, -s_rnn, s_rnn)
    b_hh = jax.random.uniform(k4, (hidden_size,), jnp.float32, -s_rnn, s_rnn)
    w_fc = jax.random.uniform(k5, (output_size, hidden_size), jnp.float32, -s_rnn, s_rnn)
    b_fc = jax.random.uniform(k6, (output_size,), jnp.float32, -s_rnn, s_rnn)

    params = prepare_params(w_ih, w_hh, b_ih, b_hh, w_fc, b_fc)

    out = temp_rnn_forward_jit(x, params)
    out = jax.block_until_ready(out)

    ref = temp_rnn_reference(x, w_ih, w_hh, b_ih, b_hh, w_fc, b_fc)
    assert out.shape == (B, output_size)
    # Tolerance loosened for bf16 MXU operands (f32 accumulation retained).
    assert jnp.allclose(out, ref, atol=5e-2, rtol=5e-2), "mismatch vs reference"

    print("KERNEL_OK")
</pallas_src>

<mosaic_0001>
module attributes {stable_mosaic.version = 11 : i64} {
  func.func @_rnn_kernel(%arg0: memref<64x16xbf16, #tpu.memory_space<vmem>>, %arg1: memref<16x32xbf16, #tpu.memory_space<vmem>>, %arg2: memref<32x32xbf16, #tpu.memory_space<vmem>>, %arg3: memref<1x32xf32, #tpu.memory_space<vmem>>, %arg4: memref<32x8xbf16, #tpu.memory_space<vmem>>, %arg5: memref<1x8xf32, #tpu.memory_space<vmem>>, %arg6: memref<8x8xf32, #tpu.memory_space<vmem>>) attributes {dimension_semantics = [], scalar_prefetch = 0 : i64, scratch_operands = 0 : i64, tpu.core_type = #tpu.core_type<tc>} {
    %c0 = arith.constant 0 : index
    %c0_0 = arith.constant 0 : index
    %0 = vector.load %arg0[%c0, %c0_0] : memref<64x16xbf16, #tpu.memory_space<vmem>>, vector<64x16xbf16>
    %c0_1 = arith.constant 0 : index
    %c0_2 = arith.constant 0 : index
    %1 = vector.load %arg1[%c0_1, %c0_2] : memref<16x32xbf16, #tpu.memory_space<vmem>>, vector<16x32xbf16>
    %cst = arith.constant dense<0.000000e+00> : vector<64x32xf32>
    %2 = tpu.matmul %0, %1, %cst {dimension_numbers = #tpu.dot_dimension_numbers<[1], [0], [0], [1], [0, 0, 1, 1], [], []>} : vector<64x16xbf16>, vector<16x32xbf16>, vector<64x32xf32> -> vector<64x32xf32>
    %c0_3 = arith.constant 0 : index
    %c0_4 = arith.constant 0 : index
    %3 = vector.load %arg3[%c0_3, %c0_4] : memref<1x32xf32, #tpu.memory_space<vmem>>, vector<1x32xf32>
    %4 = vector.broadcast %3 : vector<1x32xf32> to vector<64x32xf32>
    %5 = arith.addf %2, %4 : vector<64x32xf32>
    %c0_5 = arith.constant 0 : index
    %c0_6 = arith.constant 0 : index
    %6 = vector.load %arg2[%c0_5, %c0_6] : memref<32x32xbf16, #tpu.memory_space<vmem>>, vector<32x32xbf16>
    %cst_7 = arith.constant 0.000000e+00 : f32
    %7 = vector.broadcast %cst_7 : f32 to vector<8x32xf32>
    %8 = vector.extract_strided_slice %5 {offsets = [0, 0], sizes = [8, 32], strides = [1, 1]} : vector<64x32xf32> to vector<8x32xf32>
    %9 = arith.truncf %7 : vector<8x32xf32> to vector<8x32xbf16>
    %cst_8 = arith.constant dense<0.000000e+00> : vector<8x32xf32>
    %10 = tpu.matmul %9, %6, %cst_8 {dimension_numbers = #tpu.dot_dimension_numbers<[1], [0], [0], [1], [0, 0, 1, 1], [], []>} : vector<8x32xbf16>, vector<32x32xbf16>, vector<8x32xf32> -> vector<8x32xf32>
    %11 = arith.addf %8, %10 : vector<8x32xf32>
    %12 = math.tanh %11 : vector<8x32xf32>
    %13 = vector.extract_strided_slice %5 {offsets = [8, 0], sizes = [8, 32], strides = [1, 1]} : vector<64x32xf32> to vector<8x32xf32>
    %14 = arith.truncf %12 : vector<8x32xf32> to vector<8x32xbf16>
    %cst_9 = arith.constant dense<0.000000e+00> : vector<8x32xf32>
    %15 = tpu.matmul %14, %6, %cst_9 {dimension_numbers = #tpu.dot_dimension_numbers<[1], [0], [0], [1], [0, 0, 1, 1], [], []>} : vector<8x32xbf16>, vector<32x32xbf16>, vector<8x32xf32> -> vector<8x32xf32>
    %16 = arith.addf %13, %15 : vector<8x32xf32>
    %17 = math.tanh %16 : vector<8x32xf32>
    %18 = vector.extract_strided_slice %5 {offsets = [16, 0], sizes = [8, 32], strides = [1, 1]} : vector<64x32xf32> to vector<8x32xf32>
    %19 = arith.truncf %17 : vector<8x32xf32> to vector<8x32xbf16>
    %cst_10 = arith.constant dense<0.000000e+00> : vector<8x32xf32>
    %20 = tpu.matmul %19, %6, %cst_10 {dimension_numbers = #tpu.dot_dimension_numbers<[1], [0], [0], [1], [0, 0, 1, 1], [], []>} : vector<8x32xbf16>, vector<32x32xbf16>, vector<8x32xf32> -> vector<8x32xf32>
    %21 = arith.addf %18, %20 : vector<8x32xf32>
    %22 = math.tanh %21 : vector<8x32xf32>
    %23 = vector.extract_strided_slice %5 {offsets = [24, 0], sizes = [8, 32], strides = [1, 1]} : vector<64x32xf32> to vector<8x32xf32>
    %24 = arith.truncf %22 : vector<8x32xf32> to vector<8x32xbf16>
    %cst_11 = arith.constant dense<0.000000e+00> : vector<8x32xf32>
    %25 = tpu.matmul %24, %6, %cst_11 {dimension_numbers = #tpu.dot_dimension_numbers<[1], [0], [0], [1], [0, 0, 1, 1], [], []>} : vector<8x32xbf16>, vector<32x32xbf16>, vector<8x32xf32> -> vector<8x32xf32>
    %26 = arith.addf %23, %25 : vector<8x32xf32>
    %27 = math.tanh %26 : vector<8x32xf32>
    %28 = vector.extract_strided_slice %5 {offsets = [32, 0], sizes = [8, 32], strides = [1, 1]} : vector<64x32xf32> to vector<8x32xf32>
    %29 = arith.truncf %27 : vector<8x32xf32> to vector<8x32xbf16>
    %cst_12 = arith.constant dense<0.000000e+00> : vector<8x32xf32>
    %30 = tpu.matmul %29, %6, %cst_12 {dimension_numbers = #tpu.dot_dimension_numbers<[1], [0], [0], [1], [0, 0, 1, 1], [], []>} : vector<8x32xbf16>, vector<32x32xbf16>, vector<8x32xf32> -> vector<8x32xf32>
    %31 = arith.addf %28, %30 : vector<8x32xf32>
    %32 = math.tanh %31 : vector<8x32xf32>
    %33 = vector.extract_strided_slice %5 {offsets = [40, 0], sizes = [8, 32], strides = [1, 1]} : vector<64x32xf32> to vector<8x32xf32>
    %34 = arith.truncf %32 : vector<8x32xf32> to vector<8x32xbf16>
    %cst_13 = arith.constant dense<0.000000e+00> : vector<8x32xf32>
    %35 = tpu.matmul %34, %6, %cst_13 {dimension_numbers = #tpu.dot_dimension_numbers<[1], [0], [0], [1], [0, 0, 1, 1], [], []>} : vector<8x32xbf16>, vector<32x32xbf16>, vector<8x32xf32> -> vector<8x32xf32>
    %36 = arith.addf %33, %35 : vector<8x32xf32>
    %37 = math.tanh %36 : vector<8x32xf32>
    %38 = vector.extract_strided_slice %5 {offsets = [48, 0], sizes = [8, 32], strides = [1, 1]} : vector<64x32xf32> to vector<8x32xf32>
    %39 = arith.truncf %37 : vector<8x32xf32> to vector<8x32xbf16>
    %cst_14 = arith.constant dense<0.000000e+00> : vector<8x32xf32>
    %40 = tpu.matmul %39, %6, %cst_14 {dimension_numbers = #tpu.dot_dimension_numbers<[1], [0], [0], [1], [0, 0, 1, 1], [], []>} : vector<8x32xbf16>, vector<32x32xbf16>, vector<8x32xf32> -> vector<8x32xf32>
    %41 = arith.addf %38, %40 : vector<8x32xf32>
    %42 = math.tanh %41 : vector<8x32xf32>
    %43 = vector.extract_strided_slice %5 {offsets = [56, 0], sizes = [8, 32], strides = [1, 1]} : vector<64x32xf32> to vector<8x32xf32>
    %44 = arith.truncf %42 : vector<8x32xf32> to vector<8x32xbf16>
    %cst_15 = arith.constant dense<0.000000e+00> : vector<8x32xf32>
    %45 = tpu.matmul %44, %6, %cst_15 {dimension_numbers = #tpu.dot_dimension_numbers<[1], [0], [0], [1], [0, 0, 1, 1], [], []>} : vector<8x32xbf16>, vector<32x32xbf16>, vector<8x32xf32> -> vector<8x32xf32>
    %46 = arith.addf %43, %45 : vector<8x32xf32>
    %47 = math.tanh %46 : vector<8x32xf32>
    %48 = arith.truncf %47 : vector<8x32xf32> to vector<8x32xbf16>
    %c0_16 = arith.constant 0 : index
    %c0_17 = arith.constant 0 : index
    %49 = vector.load %arg4[%c0_16, %c0_17] : memref<32x8xbf16, #tpu.memory_space<vmem>>, vector<32x8xbf16>
    %cst_18 = arith.constant dense<0.000000e+00> : vector<8x8xf32>
    %50 = tpu.matmul %48, %49, %cst_18 {dimension_numbers = #tpu.dot_dimension_numbers<[1], [0], [0], [1], [0, 0, 1, 1], [], []>} : vector<8x32xbf16>, vector<32x8xbf16>, vector<8x8xf32> -> vector<8x8xf32>
    %c0_19 = arith.constant 0 : index
    %c0_20 = arith.constant 0 : index
    %51 = vector.load %arg5[%c0_19, %c0_20] : memref<1x8xf32, #tpu.memory_space<vmem>>, vector<1x8xf32>
    %52 = vector.broadcast %51 : vector<1x8xf32> to vector<8x8xf32>
    %53 = arith.addf %50, %52 : vector<8x8xf32>
    %c0_21 = arith.constant 0 : index
    %c0_22 = arith.constant 0 : index
    %54 = vector.load %arg6[%c0_21, %c0_22] : memref<8x8xf32, #tpu.memory_space<vmem>>, vector<8x8xf32>
    tpu.vector_store %arg6[%c0_21, %c0_22], %53 {strides = array<i32>} : memref<8x8xf32, #tpu.memory_space<vmem>>, vector<8x8xf32>,
    return
  }
}

</mosaic_0001>

<llo_original>
// kernel: temp_rnn_forward.1
$region0: #{temp_rnn_forward.1}
  #allocation0 [shape = 'u32[]', space=smem, size = 0x4, offset = 0x4, fixed_abs, tag = 'smem constant byte address 0x4 - core index']
  #allocation1 [shape = 'u32[72,128]{1,0:T(1,128)}', space=vmem, size = 0x9000, scoped, tag = 'internal scratch']
  %s0 = inlined_call_operand.vmem [shape: bf16[64,16], index: 0, kind: input, shape index: {}]
  %s1 = inlined_call_operand.vmem [shape: bf16[16,32], index: 1, kind: input, shape index: {}]
  %s2 = inlined_call_operand.vmem [shape: bf16[32,32], index: 2, kind: input, shape index: {}]
  %s3 = inlined_call_operand.vmem [shape: f32[1,32], index: 3, kind: input, shape index: {}]
  %s4 = inlined_call_operand.vmem [shape: bf16[32,8], index: 4, kind: input, shape index: {}]
  %s5 = inlined_call_operand.vmem [shape: f32[1,8], index: 5, kind: input, shape index: {}]
  %s6 = inlined_call_operand.vmem [shape: f32[8,8], index: 6, kind: output, shape index: {}]
  %s7 = sld [smem:[#allocation0]]
  $region34: #{temp_rnn_forward.1} parent=0
    _
  %s9 = ssub.s32 1, %s7
  %s10 = scalar_select 0, %s9, %s7
  // Predicated region
  $region2: #{temp_rnn_forward.1} parent=0 // pred_check
    _
  $region3: #{temp_rnn_forward.1} parent=0 // pred_check_branch
    %12 = sbr.rel (0) target = $region5
  $region4: #{temp_rnn_forward.1} parent=0 // pred_region
    _
  $region5: #{temp_rnn_forward.1} parent=0 // pred_fallthru
    _
  // Predicated region
  $region6: #{temp_rnn_forward.1} parent=0 // pred_check
    _
  $region7: #{temp_rnn_forward.1} parent=0 // pred_check_branch
    %14 = sbr.rel (0) target = $region9
  $region8: #{temp_rnn_forward.1} parent=0 // pred_region
    _
  $region9: #{temp_rnn_forward.1} parent=0 // pred_fallthru
    _
  // Predicated region
  $region10: #{temp_rnn_forward.1} parent=0 // pred_check
    _
  $region11: #{temp_rnn_forward.1} parent=0 // pred_check_branch
    %16 = sbr.rel (0) target = $region13
  $region12: #{temp_rnn_forward.1} parent=0 // pred_region
    _
  $region13: #{temp_rnn_forward.1} parent=0 // pred_fallthru
    _
  // Predicated region
  $region14: #{temp_rnn_forward.1} parent=0 // pred_check
    _
  $region15: #{temp_rnn_forward.1} parent=0 // pred_check_branch
    %18 = sbr.rel (0) target = $region17
  $region16: #{temp_rnn_forward.1} parent=0 // pred_region
    _
  $region17: #{temp_rnn_forward.1} parent=0 // pred_fallthru
    _
  // Predicated region
  $region18: #{temp_rnn_forward.1} parent=0 // pred_check
    _
  $region19: #{temp_rnn_forward.1} parent=0 // pred_check_branch
    %20 = sbr.rel (0) target = $region21
  $region20: #{temp_rnn_forward.1} parent=0 // pred_region
    _
  $region21: #{temp_rnn_forward.1} parent=0 // pred_fallthru
    _
  // Predicated region
  $region22: #{temp_rnn_forward.1} parent=0 // pred_check
    _
  $region23: #{temp_rnn_forward.1} parent=0 // pred_check_branch
    %22 = sbr.rel (0) target = $region25
  $region24: #{temp_rnn_forward.1} parent=0 // pred_region
    _
  $region25: #{temp_rnn_forward.1} parent=0 // pred_fallthru
    _
  %v24 = vld [vmem:[%s0] sm:$0xf]
  %v25 = vld [vmem:[%s0 + $0x4] sm:$0xf]
  %v26 = vld [vmem:[%s0 + $0x8] sm:$0xf]
  %v27 = vld [vmem:[%s0 + $0xc] sm:$0xf]
  %v28 = vld [vmem:[%s0 + $0x10] sm:$0xf]
  %v29 = vld [vmem:[%s0 + $0x14] sm:$0xf]
  %v30 = vld [vmem:[%s0 + $0x18] sm:$0xf]
  %v31 = vld [vmem:[%s0 + $0x1c] sm:$0xf]
  %v32 = vld [vmem:[%s1] sm:$0xf]
  %v33 = vld [vmem:[%s1 + $0x4] sm:$0xf]
  %v34 = vld [vmem:[%s3] sm:$0x1]
  %v36 = vperm.slane %v34, 0
  %v46 = vunpack.c.l.b16 %v24
  %v47 = vunpack.c.l.b16 %v25
  %v48 = vunpack.c.l.b16 %v26
  %v49 = vunpack.c.l.b16 %v27
  %v50 = vunpack.c.l.b16 %v28
  %v51 = vunpack.c.l.b16 %v29
  %v52 = vunpack.c.l.b16 %v30
  %v53 = vunpack.c.l.b16 %v31
  %v54 = vpack.c.b16 %v47, %v46
  %v55 = vpack.c.b16 %v49, %v48
  %v56 = vpack.c.b16 %v51, %v50
  %v57 = vpack.c.b16 %v53, %v52
  %v60 = vunpack.c.l.b16 %v32
  %v61 = vunpack.c.l.b16 %v33
  %v62 = vpack.c.b16 %v61, %v60
  %vm64 = vcmask 130048
  %v66 = vsel %vm64, %v54, 0
  %v69 = vsel %vm64, %v55, 0
  %v72 = vsel %vm64, %v56, 0
  %v75 = vsel %vm64, %v57, 0
  %77 = vmatpush.bf16.msra.mxu0 0
  %78 = vmatpush.bf16.msra.mxu0 0
  %79 = vmatpush.bf16.msra.mxu0 0
  %80 = vmatpush.bf16.msra.mxu0 0
  %81 = vmatpush.bf16.msra.mxu0 0
  %82 = vmatpush.bf16.msra.mxu0 0
  %83 = vmatpush.bf16.msra.mxu0 0
  %84 = vmatpush.bf16.msra.mxu0 %v62
  %85 = vmatmul.bf16.gmra.mxu0 %v66
  %v86 = vpop.f32.mrf.mxu0
  %v87 = vadd.f32 %v36, %v86
  %v88 = vpop.f32.mrf.mxu0
  %v89 = vadd.f32 %v36, %v88
  %90 = vmatmul.bf16.gmra.mxu0 %v69
  %v91 = vpop.f32.mrf.mxu0
  %v92 = vadd.f32 %v36, %v91
  %v93 = vpop.f32.mrf.mxu0
  %v94 = vadd.f32 %v36, %v93
  %95 = vmatmul.bf16.gmra.mxu0 %v72
  %v96 = vpop.f32.mrf.mxu0
  %v97 = vadd.f32 %v36, %v96
  %v98 = vpop.f32.mrf.mxu0
  %v99 = vadd.f32 %v36, %v98
  %100 = vmatmul.bf16.gmra.mxu0 %v75
  %v101 = vpop.f32.mrf.mxu0
  %v102 = vadd.f32 %v36, %v101
  %v103 = vpop.f32.mrf.mxu0
  %v104 = vadd.f32 %v36, %v103
  %105 = vdwg.mxu0
  %v106 = vld [vmem:[%s2] sm:$0xf]
  %v107 = vld [vmem:[%s2 + $0x4] sm:$0xf]
  %v108 = vld [vmem:[%s2 + $0x8] sm:$0xf]
  %v109 = vld [vmem:[%s2 + $0xc] sm:$0xf]
  %v114 = vunpack.c.l.b16 %v106
  %v115 = vunpack.c.l.b16 %v107
  %v116 = vunpack.c.l.b16 %v108
  %v117 = vunpack.c.l.b16 %v109
  %v118 = vpack.c.b16 %v115, %v114
  %v119 = vpack.c.b16 %v117, %v116
  %vm122 = vcmask 261120
  %v124 = vsel %vm122, 0, 0
  %126 = vmatpush.bf16.msra.mxu0 0
  %127 = vmatpush.bf16.msra.mxu0 0
  %128 = vmatpush.bf16.msra.mxu0 0
  %129 = vmatpush.bf16.msra.mxu0 0
  %130 = vmatpush.bf16.msra.mxu0 0
  %131 = vmatpush.bf16.msra.mxu0 0
  %132 = vmatpush.bf16.msra.mxu0 %v119
  %133 = vmatpush.bf16.msra.mxu0 %v118
  %134 = vmatmul.bf16.gmra.mxu0 %v124
  %v135 = vpop.f32.mrf.mxu0
  %v136 = vadd.f32 0.0, %v135
  %v137 = vpop.f32.mrf.mxu0
  %138 = vdwg.mxu0
  %v139 = vadd.f32 %v87, %v136
  %v140 = vtanh.pop %v139
  %v141 = vpack.c.bf16 %v140, %v140
  %v143 = vsel %vm122, %v141, 0
  %145 = vmatpush.bf16.msra.mxu0 0
  %146 = vmatpush.bf16.msra.mxu0 0
  %147 = vmatpush.bf16.msra.mxu0 0
  %148 = vmatpush.bf16.msra.mxu0 0
  %149 = vmatpush.bf16.msra.mxu0 0
  %150 = vmatpush.bf16.msra.mxu0 0
  %151 = vmatpush.bf16.msra.mxu0 %v119
  %152 = vmatpush.bf16.msra.mxu0 %v118
  %153 = vmatmul.bf16.gmra.mxu0 %v143
  %v154 = vpop.f32.mrf.mxu0
  %v155 = vadd.f32 0.0, %v154
  %v156 = vpop.f32.mrf.mxu0
  %157 = vdwg.mxu0
  %v158 = vadd.f32 %v89, %v155
  %v159 = vtanh.pop %v158
  %v160 = vpack.c.bf16 %v159, %v159
  %v162 = vsel %vm122, %v160, 0
  %164 = vmatpush.bf16.msra.mxu0 0
  %165 = vmatpush.bf16.msra.mxu0 0
  %166 = vmatpush.bf16.msra.mxu0 0
  %167 = vmatpush.bf16.msra.mxu0 0
  %168 = vmatpush.bf16.msra.mxu0 0
  %169 = vmatpush.bf16.msra.mxu0 0
  %170 = vmatpush.bf16.msra.mxu0 %v119
  %171 = vmatpush.bf16.msra.mxu0 %v118
  %172 = vmatmul.bf16.gmra.mxu0 %v162
  %v173 = vpop.f32.mrf.mxu0
  %v174 = vadd.f32 0.0, %v173
  %v175 = vpop.f32.mrf.mxu0
  %176 = vdwg.mxu0
  %v177 = vadd.f32 %v92, %v174
  %v178 = vtanh.pop %v177
  %v179 = vpack.c.bf16 %v178, %v178
  %v181 = vsel %vm122, %v179, 0
  %183 = vmatpush.bf16.msra.mxu0 0
  %184 = vmatpush.bf16.msra.mxu0 0
  %185 = vmatpush.bf16.msra.mxu0 0
  %186 = vmatpush.bf16.msra.mxu0 0
  %187 = vmatpush.bf16.msra.mxu0 0
  %188 = vmatpush.bf16.msra.mxu0 0
  %189 = vmatpush.bf16.msra.mxu0 %v119
  %190 = vmatpush.bf16.msra.mxu0 %v118
  %191 = vmatmul.bf16.gmra.mxu0 %v181
  %v192 = vpop.f32.mrf.mxu0
  %v193 = vadd.f32 0.0, %v192
  %v194 = vpop.f32.mrf.mxu0
  %195 = vdwg.mxu0
  %v196 = vadd.f32 %v94, %v193
  %v197 = vtanh.pop %v196
  %v198 = vpack.c.bf16 %v197, %v197
  %v200 = vsel %vm122, %v198, 0
  %202 = vmatpush.bf16.msra.mxu0 0
  %203 = vmatpush.bf16.msra.mxu0 0
  %204 = vmatpush.bf16.msra.mxu0 0
  %205 = vmatpush.bf16.msra.mxu0 0
  %206 = vmatpush.bf16.msra.mxu0 0
  %207 = vmatpush.bf16.msra.mxu0 0
  %208 = vmatpush.bf16.msra.mxu0 %v119
  %209 = vmatpush.bf16.msra.mxu0 %v118
  %210 = vmatmul.bf16.gmra.mxu0 %v200
  %v211 = vpop.f32.mrf.mxu0
  %v212 = vadd.f32 0.0, %v211
  %v213 = vpop.f32.mrf.mxu0
  %214 = vdwg.mxu0
  %v215 = vadd.f32 %v97, %v212
  %v216 = vtanh.pop %v215
  %v217 = vpack.c.bf16 %v216, %v216
  %v219 = vsel %vm122, %v217, 0
  %221 = vmatpush.bf16.msra.mxu0 0
  %222 = vmatpush.bf16.msra.mxu0 0
  %223 = vmatpush.bf16.msra.mxu0 0
  %224 = vmatpush.bf16.msra.mxu0 0
  %225 = vmatpush.bf16.msra.mxu0 0
  %226 = vmatpush.bf16.msra.mxu0 0
  %227 = vmatpush.bf16.msra.mxu0 %v119
  %228 = vmatpush.bf16.msra.mxu0 %v118
  %229 = vmatmul.bf16.gmra.mxu0 %v219
  %v230 = vpop.f32.mrf.mxu0
  %v231 = vadd.f32 0.0, %v230
  %v232 = vpop.f32.mrf.mxu0
  %233 = vdwg.mxu0
  %v234 = vadd.f32 %v99, %v231
  %v235 = vtanh.pop %v234
  %v236 = vpack.c.bf16 %v235, %v235
  %v238 = vsel %vm122, %v236, 0
  %240 = vmatpush.bf16.msra.mxu0 0
  %241 = vmatpush.bf16.msra.mxu0 0
  %242 = vmatpush.bf16.msra.mxu0 0
  %243 = vmatpush.bf16.msra.mxu0 0
  %244 = vmatpush.bf16.msra.mxu0 0
  %245 = vmatpush.bf16.msra.mxu0 0
  %246 = vmatpush.bf16.msra.mxu0 %v119
  %247 = vmatpush.bf16.msra.mxu0 %v118
  %248 = vmatmul.bf16.gmra.mxu0 %v238
  %v249 = vpop.f32.mrf.mxu0
  %v250 = vadd.f32 0.0, %v249
  %v251 = vpop.f32.mrf.mxu0
  %252 = vdwg.mxu0
  %v253 = vadd.f32 %v102, %v250
  %v254 = vtanh.pop %v253
  %v255 = vpack.c.bf16 %v254, %v254
  %v257 = vsel %vm122, %v255, 0
  %259 = vmatpush.bf16.msra.mxu0 0
  %260 = vmatpush.bf16.msra.mxu0 0
  %261 = vmatpush.bf16.msra.mxu0 0
  %262 = vmatpush.bf16.msra.mxu0 0
  %263 = vmatpush.bf16.msra.mxu0 0
  %264 = vmatpush.bf16.msra.mxu0 0
  %265 = vmatpush.bf16.msra.mxu0 %v119
  %266 = vmatpush.bf16.msra.mxu0 %v118
  %267 = vmatmul.bf16.gmra.mxu0 %v257
  %v268 = vpop.f32.mrf.mxu0
  %v269 = vadd.f32 0.0, %v268
  %v270 = vpop.f32.mrf.mxu0
  %271 = vdwg.mxu0
  %v272 = vadd.f32 %v104, %v269
  %v273 = vtanh.pop %v272
  %v274 = vpack.c.bf16 %v273, %v273
  %v275 = vld [vmem:[%s4] sm:$0xf]
  %v276 = vld [vmem:[%s4 + $0x4] sm:$0xf]
  %v277 = vld [vmem:[%s4 + $0x8] sm:$0xf]
  %v278 = vld [vmem:[%s4 + $0xc] sm:$0xf]
  %v279 = vld [vmem:[%s5] sm:$0x1]
  %v281 = vperm.slane %v279, 0
  %v287 = vunpack.c.l.b16 %v275
  %v288 = vunpack.c.l.b16 %v276
  %v289 = vunpack.c.l.b16 %v277
  %v290 = vunpack.c.l.b16 %v278
  %v291 = vpack.c.b16 %v288, %v287
  %v292 = vpack.c.b16 %v290, %v289
  %v296 = vsel %vm122, %v274, 0
  %298 = vmatpush.bf16.msra.mxu0 0
  %299 = vmatpush.bf16.msra.mxu0 0
  %300 = vmatpush.bf16.msra.mxu0 0
  %301 = vmatpush.bf16.msra.mxu0 0
  %302 = vmatpush.bf16.msra.mxu0 0
  %303 = vmatpush.bf16.msra.mxu0 0
  %304 = vmatpush.bf16.msra.mxu0 %v292
  %305 = vmatpush.bf16.msra.mxu0 %v291
  %306 = vmatmul.bf16.gmra.mxu0 %v296
  %v307 = vpop.f32.mrf.mxu0
  %v308 = vadd.f32 %v281, %v307
  %v309 = vpop.f32.mrf.mxu0
  %310 = vdwg.mxu0
  %vm311 = vcmask 64512
  %312 = vst.msk [vmem:[%s6] sm:$0xff] %vm311, %v308
  // Predicated region
  $region26: #{temp_rnn_forward.1} parent=0 // pred_check
    _
  $region27: #{temp_rnn_forward.1} parent=0 // pred_check_branch
    %314 = sbr.rel (0) target = $region29
  $region28: #{temp_rnn_forward.1} parent=0 // pred_region
    _
  $region29: #{temp_rnn_forward.1} parent=0 // pred_fallthru
    _
  // Predicated region
  $region30: #{temp_rnn_forward.1} parent=0 // pred_check
    _
  $region31: #{temp_rnn_forward.1} parent=0 // pred_check_branch
    %316 = sbr.rel (0) target = $region33
  $region32: #{temp_rnn_forward.1} parent=0 // pred_region
    _
  $region33: #{temp_rnn_forward.1} parent=0 // pred_fallthru
    _

</llo_original>
